<compile_context>
chip_gen: v7x
topology: tpu7x:2x2x1
jax: 0.10.0
libtpu: 0.0.40
codegen_flags: <defaults>
</compile_context>

<pallas_src>
import functools
from types import SimpleNamespace

import jax
import jax.numpy as jnp
from jax.experimental import pallas as pl
from jax.experimental.pallas import tpu as pltpu


# --------------------------------------------------------------------------
# Fused query-generation kernel (box sampling + voxel sampling, one launch)
# --------------------------------------------------------------------------
#
# Kernel-internal layout is lane-dense (B, 3, NQ_PAD): the query index maps to
# the 128-wide lane axis (NQ_PAD = ceil(num_query/128)*128) so stores are
# unmasked full-lane vst's instead of 3/128-lane masked stores.
#   lanes [0 : num_query_box)            -> query_box = u*(hi-lo) + lo
#   lanes [num_query_box : num_query)    -> query_vox = u*(vs+pad) + round(p/vs)*vs - pad/2
# (the two original formulas, affine-folded into single FMAs; no divides).

def _query_kernel(u_ref, pts_ref, o_ref, *, num_query_box, box_a, box_b,
                  voxel_size, padding_size):
    shape = o_ref.shape                                     # (B, 3, NQ_PAD)
    u = u_ref[...]                                          # uniform [0,1)

    # per-channel (axis 1) affine constants, compile-time baked:
    #   (u*2-1)*(hi-lo)/2 + (hi+lo)/2  ==  u*(hi-lo) + lo
    c = jax.lax.broadcasted_iota(jnp.int32, shape, 1)
    a = jnp.where(c == 0, box_a[0], jnp.where(c == 1, box_a[1], box_a[2]))
    b = jnp.where(c == 0, box_b[0], jnp.where(c == 1, box_b[1], box_b[2]))
    q_box = u * a + b

    # voxelize_to_ground sampling stage: round points to the voxel grid and
    # draw a uniform sample inside the padded voxel (multiply by 1/vs, no div)
    inv_vs = 1.0 / voxel_size
    lower = jnp.round(pts_ref[...] * inv_vs) * voxel_size
    q_vox = u * (voxel_size + padding_size) + (lower - 0.5 * padding_size)

    lane = jax.lax.broadcasted_iota(jnp.int32, shape, 2)
    o_ref[...] = jnp.where(lane < num_query_box, q_box, q_vox)


def make_query_pallas(obs, rng, *, num_query_box, num_query_vox,
                      box_a, box_b, voxel_size, padding_size):
    """Returns data['query'] of shape (B, num_query_box + num_query_vox, 3)."""
    B = obs.shape[0]
    nq = num_query_box + num_query_vox
    nq_pad = ((nq + 127) // 128) * 128

    # uniform randoms generated outside the kernel (portable: TPU + interpret)
    u = jax.random.uniform(rng, (B, 3, nq_pad), jnp.float32)

    # lane-dense seed points for the voxel half: (B, 3, NQ_PAD), voxel rows at
    # lane positions [num_query_box : num_query_box + num_query_vox)
    pts_t = jnp.transpose(obs[:, :num_query_vox, :3].astype(jnp.float32), (0, 2, 1))
    pts_full = jnp.zeros((B, 3, nq_pad), jnp.float32)
    pts_full = pts_full.at[:, :, num_query_box:num_query_box + num_query_vox].set(pts_t)

    kern = functools.partial(
        _query_kernel, num_query_box=num_query_box, box_a=box_a, box_b=box_b,
        voxel_size=float(voxel_size), padding_size=float(padding_size))

    # Whole problem is a few KB -> single block, no grid, no per-step overhead.
    out = pl.pallas_call(
        kern,
        in_specs=[pl.BlockSpec(memory_space=pltpu.MemorySpace.VMEM),   # uniforms
                  pl.BlockSpec(memory_space=pltpu.MemorySpace.VMEM)],  # points
        out_specs=pl.BlockSpec(memory_space=pltpu.MemorySpace.VMEM),
        out_shape=jax.ShapeDtypeStruct((B, 3, nq_pad), jnp.float32),
    )(u, pts_full)

    # layout plumbing back to the (B, num_query, 3) contract of the reference
    return jnp.transpose(out, (0, 2, 1))[:, :nq, :]


# --------------------------------------------------------------------------
# Fused latent-consistency loss kernel (all active pairs in one launch)
# --------------------------------------------------------------------------

_LANES = 128


def _lat_loss_kernel(z_ref, zr_ref, o_ref, *, metric, beta):
    n_pairs = z_ref.shape[0]
    rows = []
    for p in range(n_pairs):                     # static, tiny (1 or 2)
        z = z_ref[p]
        zr = zr_ref[p]
        d = z - zr
        if metric == "l1":
            val = jnp.mean(jnp.abs(d))
        elif metric == "smooth":
            ad = jnp.abs(d)
            val = jnp.mean(jnp.where(ad < beta, (0.5 / beta) * d * d,
                                     ad - 0.5 * beta))
        elif metric == "l2":
            val = jnp.mean(d * d)
        elif metric == "cos":
            # torch.cosine_similarity: w12 * rsqrt(max(w1*w2, eps^2))
            eps = 1e-8
            num = jnp.sum(z * zr, axis=-1, keepdims=True)
            n1 = jnp.sum(z * z, axis=-1, keepdims=True)
            n2 = jnp.sum(zr * zr, axis=-1, keepdims=True)
            sim = num * jax.lax.rsqrt(jnp.maximum(n1 * n2, eps * eps))
            val = 1.0 - jnp.mean(sim)
        else:
            raise ValueError(f"unknown metric {metric}")
        # broadcast the scalar across all 128 lanes -> full unmasked store
        rows.append(jnp.broadcast_to(val, (1, o_ref.shape[1])))
    o_ref[...] = jnp.concatenate(rows, axis=0).astype(jnp.float32)


def lat_losses_pallas(pairs, metric="smooth", beta=1.0):
    """pairs: list of (z, z_ref) -> list of scalar losses (one pallas_call)."""
    z = jnp.stack([jnp.asarray(a, jnp.float32) for a, _ in pairs])
    zr = jnp.stack([jnp.asarray(b, jnp.float32) for _, b in pairs])
    n_pairs = z.shape[0]
    out = pl.pallas_call(
        functools.partial(_lat_loss_kernel, metric=metric, beta=float(beta)),
        in_specs=[pl.BlockSpec(memory_space=pltpu.MemorySpace.VMEM),
                  pl.BlockSpec(memory_space=pltpu.MemorySpace.VMEM)],
        out_specs=pl.BlockSpec(memory_space=pltpu.MemorySpace.VMEM),
        out_shape=jax.ShapeDtypeStruct((n_pairs, _LANES), jnp.float32),
    )(z, zr)
    return [out[p, 0] for p in range(n_pairs)]


# --------------------------------------------------------------------------
# Pipeline (JAX / Pallas)
# --------------------------------------------------------------------------

class Pipeline:
    def __init__(self, config):
        self.config = config
        # TODO(synk): Renderer / Predictor / Evaluater are external CUDA modules whose
        # definitions are not in the source file; their compute is not reproduced here.

    def forward(self, data, z_rec_cur=None, val_test=False, *, rng):
        cfg = self.config
        input_dim = cfg.dimensions.input_dim

        # ---- observation preprocessing -------------------------------------------
        # TODO(synk): Renderer.pcd_to_observation / sample_mesh (ee point sampling)
        # require mesh rasterization; only the channel slice to input_dim is kept.
        data["obj_observed"] = data["obj_observed"][..., :input_dim]

        # ---- query generation (non val_test path), one fused Pallas kernel --------
        scale_hi = float(cfg.augmentation.scale[1])
        lo = (-0.35 * scale_hi, -0.55 * scale_hi, -0.05 * scale_hi)
        hi = (0.35 * scale_hi, 0.55 * scale_hi, 0.15 * scale_hi)
        box_a = tuple(h - l for h, l in zip(hi, lo))   # == 2 * (hi-lo)/2
        box_b = lo                                     # == (hi+lo)/2 - (hi-lo)/2
        num_query_box = cfg.dimensions.num_query_out // 2
        num_query_vox = cfg.dimensions.num_query_out - num_query_box

        # TODO(synk): voxelize_to_ground's per-batch torch.unique / scatter_reduce /
        # ground-column fill / randperm are data-dependent set ops with no clean
        # Pallas equivalent; only the voxel-rounding + padded in-voxel uniform
        # sampling stage is done in-kernel, seeded from the first num_query_vox
        # observed points.
        data["query"] = make_query_pallas(
            data["obj_observed"], rng,
            num_query_box=num_query_box, num_query_vox=num_query_vox,
            box_a=box_a, box_b=box_b,
            voxel_size=cfg.augmentation.render.voxel_size * 2,
            padding_size=cfg.augmentation.render.voxel_size * 10)

        loss, loss_dict = 0.0, {}
        acc, acc_dict = 0.0, {}

        # ---- reconstruct / predict -------------------------------------------------
        # TODO(synk): Predictor.reconstruct / Predictor.predict, Evaluater.loss /
        # Evaluater.accuracy, and get_label (kaolin check_sign / point_to_mesh_distance)
        # are undefined external modules; the latent codes are supplied through `data`
        # and only the latent-consistency loss path is reproduced (Pallas reduction).
        lat_pairs, lat_names = [], []
        if cfg.loss.w_lat_nxt > 0:
            lat_pairs.append((data["z_pre_nxt"], data["z_rec_nxt"]))
            lat_names.append("lat_loss_nxt")
        if cfg.loss.w_lat_nxtnxt > 0:
            lat_pairs.append((data["z_pre_nxtnxt"], data["z_rec_nxtnxt"]))
            lat_names.append("lat_loss_nxtnxt")
        if lat_pairs:
            vals = lat_losses_pallas(lat_pairs, metric=cfg.loss.lat_metric,
                                     beta=getattr(cfg.loss, "lat_beta", 1.0))
            for name, v in zip(lat_names, vals):
                loss_dict[name] = v

        for prefix in ["rec", "pre", "lat"]:
            for postfix in ["", "_nxt", "_nxtnxt"][: cfg.dataset.next_frames + 1]:
                if f"{prefix}_loss{postfix}" not in loss_dict:
                    continue
                w_postfix = "_cur" if postfix == "" else postfix
                loss = loss + loss_dict[f"{prefix}_loss{postfix}"] * getattr(
                    cfg.loss, f"w_{prefix}{w_postfix}")

        for k in cfg.loss.acc_keys:
            if k not in acc_dict:
                raise ValueError(f"requested accuracy key {k} not computed")
            acc += acc_dict[k]

        return ((loss, acc, loss_dict, acc_dict), data)


# --------------------------------------------------------------------------
# Main
# --------------------------------------------------------------------------

if __name__ == "__main__":
    config = SimpleNamespace(
        dimensions=SimpleNamespace(input_dim=3, num_query_out=64),
        dataset=SimpleNamespace(n_points=64, next_frames=1),
        augmentation=SimpleNamespace(
            scale=[0.8, 1.2], render=SimpleNamespace(voxel_size=0.01)
        ),
        loss=SimpleNamespace(
            w_lat_nxt=1.0,
            w_lat_nxtnxt=0.0,
            lat_metric="smooth",
            acc_keys=[],
            get_rec_cur=True,
            get_rec_nxt=True,
            get_rec_nxtnxt=False,
            get_pre_nxt=True,
            get_pre_nxtnxt=False,
        ),
    )

    key = jax.random.PRNGKey(0)
    k1, k2, k3, k4 = jax.random.split(key, 4)

    B, N, Dz = 2, 64, 32
    obj_observed = jax.random.uniform(k1, (B, N, 4), jnp.float32, minval=-0.3, maxval=0.3)
    z_rec_nxt = jax.random.normal(k2, (B, Dz), jnp.float32)
    z_pre_nxt = jax.random.normal(k3, (B, Dz), jnp.float32)

    data = {
        "obj_observed": obj_observed,
        "z_rec_nxt": z_rec_nxt,
        "z_pre_nxt": z_pre_nxt,
    }

    pipe = Pipeline(config)
    (loss, acc, loss_dict, acc_dict), data_out = pipe.forward(data, rng=k4)

    jax.block_until_ready(loss)
    jax.block_until_ready(data_out["query"])

    assert data_out["query"].shape == (B, config.dimensions.num_query_out, 3)
    assert loss_dict["lat_loss_nxt"].shape == ()
    assert bool(jnp.isfinite(loss))
    assert bool(jnp.all(jnp.isfinite(data_out["query"])))

    print("KERNEL_OK")
</pallas_src>

<mosaic_0001>
module attributes {stable_mosaic.version = 11 : i64} {
  func.func @_query_kernel(%arg0: memref<2x3x128xf32, #tpu.memory_space<vmem>>, %arg1: memref<2x3x128xf32, #tpu.memory_space<vmem>>, %arg2: memref<2x3x128xf32, #tpu.memory_space<vmem>>) attributes {dimension_semantics = [], scalar_prefetch = 0 : i64, scratch_operands = 0 : i64, tpu.core_type = #tpu.core_type<tc>} {
    %c0 = arith.constant 0 : index
    %c0_0 = arith.constant 0 : index
    %c0_1 = arith.constant 0 : index
    %0 = vector.load %arg0[%c0, %c0_0, %c0_1] : memref<2x3x128xf32, #tpu.memory_space<vmem>>, vector<2x3x128xf32>
    %1 = tpu.iota {dimensions = array<i32: 1>} : vector<2x3x128xi32>
    %c0_i32 = arith.constant 0 : i32
    %2 = vector.broadcast %c0_i32 : i32 to vector<2x3x128xi32>
    %3 = arith.cmpi eq, %1, %2 : vector<2x3x128xi32>
    %c1_i32 = arith.constant 1 : i32
    %4 = vector.broadcast %c1_i32 : i32 to vector<2x3x128xi32>
    %5 = arith.cmpi eq, %1, %4 : vector<2x3x128xi32>
    %cst = arith.constant 1.320000e+00 : f32
    %cst_2 = arith.constant 2.400000e-01 : f32
    %6 = vector.broadcast %cst : f32 to vector<2x3x128xf32>
    %7 = vector.broadcast %cst_2 : f32 to vector<2x3x128xf32>
    %8 = arith.select %5, %6, %7 : vector<2x3x128xi1>, vector<2x3x128xf32>
    %cst_3 = arith.constant 0.839999973 : f32
    %9 = vector.broadcast %cst_3 : f32 to vector<2x3x128xf32>
    %10 = arith.select %3, %9, %8 : vector<2x3x128xi1>, vector<2x3x128xf32>
    %c0_i32_4 = arith.constant 0 : i32
    %11 = vector.broadcast %c0_i32_4 : i32 to vector<2x3x128xi32>
    %12 = arith.cmpi eq, %1, %11 : vector<2x3x128xi32>
    %c1_i32_5 = arith.constant 1 : i32
    %13 = vector.broadcast %c1_i32_5 : i32 to vector<2x3x128xi32>
    %14 = arith.cmpi eq, %1, %13 : vector<2x3x128xi32>
    %cst_6 = arith.constant -6.600000e-01 : f32
    %cst_7 = arith.constant -6.000000e-02 : f32
    %15 = vector.broadcast %cst_6 : f32 to vector<2x3x128xf32>
    %16 = vector.broadcast %cst_7 : f32 to vector<2x3x128xf32>
    %17 = arith.select %14, %15, %16 : vector<2x3x128xi1>, vector<2x3x128xf32>
    %cst_8 = arith.constant -4.200000e-01 : f32
    %18 = vector.broadcast %cst_8 : f32 to vector<2x3x128xf32>
    %19 = arith.select %12, %18, %17 : vector<2x3x128xi1>, vector<2x3x128xf32>
    %20 = arith.mulf %0, %10 : vector<2x3x128xf32>
    %21 = arith.addf %20, %19 : vector<2x3x128xf32>
    %c0_9 = arith.constant 0 : index
    %c0_10 = arith.constant 0 : index
    %c0_11 = arith.constant 0 : index
    %22 = vector.load %arg1[%c0_9, %c0_10, %c0_11] : memref<2x3x128xf32, #tpu.memory_space<vmem>>, vector<2x3x128xf32>
    %cst_12 = arith.constant 5.000000e+01 : f32
    %23 = vector.broadcast %cst_12 : f32 to vector<2x3x128xf32>
    %24 = arith.mulf %22, %23 : vector<2x3x128xf32>
    %25 = math.roundeven %24 : vector<2x3x128xf32>
    %cst_13 = arith.constant 2.000000e-02 : f32
    %26 = vector.broadcast %cst_13 : f32 to vector<2x3x128xf32>
    %27 = arith.mulf %25, %26 : vector<2x3x128xf32>
    %cst_14 = arith.constant 1.200000e-01 : f32
    %28 = vector.broadcast %cst_14 : f32 to vector<2x3x128xf32>
    %29 = arith.mulf %0, %28 : vector<2x3x128xf32>
    %cst_15 = arith.constant 5.000000e-02 : f32
    %30 = vector.broadcast %cst_15 : f32 to vector<2x3x128xf32>
    %31 = arith.subf %27, %30 : vector<2x3x128xf32>
    %32 = arith.addf %29, %31 : vector<2x3x128xf32>
    %33 = tpu.iota {dimensions = array<i32: 2>} : vector<2x3x128xi32>
    %c32_i32 = arith.constant 32 : i32
    %34 = vector.broadcast %c32_i32 : i32 to vector<2x3x128xi32>
    %35 = arith.cmpi slt, %33, %34 : vector<2x3x128xi32>
    %36 = arith.select %35, %21, %32 : vector<2x3x128xi1>, vector<2x3x128xf32>
    %c0_16 = arith.constant 0 : index
    %c0_17 = arith.constant 0 : index
    %c0_18 = arith.constant 0 : index
    %37 = vector.load %arg2[%c0_16, %c0_17, %c0_18] : memref<2x3x128xf32, #tpu.memory_space<vmem>>, vector<2x3x128xf32>
    tpu.vector_store %arg2[%c0_16, %c0_17, %c0_18], %36 {strides = array<i32>} : memref<2x3x128xf32, #tpu.memory_space<vmem>>, vector<2x3x128xf32>,
    return
  }
}

</mosaic_0001>

<llo_original>
// kernel: tpu_custom_call.1
$region0: #{tpu_custom_call.1}
  #allocation0 [shape = 'u32[]', space=smem, size = 0x4, offset = 0x4, fixed_abs, tag = 'smem constant byte address 0x4 - core index']
  #allocation1 [shape = 'u32[144,128]{1,0:T(1,128)}', space=vmem, size = 0x12000, scoped, tag = 'internal scratch']
  %s0 = inlined_call_operand.vmem [shape: f32[2,3,128], index: 0, kind: input, shape index: {}]
  %s1 = inlined_call_operand.vmem [shape: f32[2,3,128], index: 1, kind: input, shape index: {}]
  %s2 = inlined_call_operand.vmem [shape: f32[2,3,128], index: 2, kind: output, shape index: {}]
  %s3 = sld [smem:[#allocation0]]
  $region18: #{tpu_custom_call.1} parent=0
    _
  %s5 = ssub.s32 1, %s3
  %s6 = scalar_select 0, %s5, %s3
  // Predicated region
  $region2: #{tpu_custom_call.1} parent=0 // pred_check
    _
  $region3: #{tpu_custom_call.1} parent=0 // pred_check_branch
    %8 = sbr.rel (0) target = $region5
  $region4: #{tpu_custom_call.1} parent=0 // pred_region
    _
  $region5: #{tpu_custom_call.1} parent=0 // pred_fallthru
    _
  // Predicated region
  $region6: #{tpu_custom_call.1} parent=0 // pred_check
    _
  $region7: #{tpu_custom_call.1} parent=0 // pred_check_branch
    %10 = sbr.rel (0) target = $region9
  $region8: #{tpu_custom_call.1} parent=0 // pred_region
    _
  $region9: #{tpu_custom_call.1} parent=0 // pred_fallthru
    _
  %v11 = vld [vmem:[%s0] sm:$0x7]
  %v12 = vld [vmem:[%s0 + $0x4] sm:$0x7]
  %v13 = vlaneseq
  %v14 = vshrl.u32 %v13, 7
  %vm15 = vcmp.eq.s32.totalorder %v14, 0
  %vm16 = vcmp.eq.s32.totalorder %v14, 1
  %v17 = vsel %vm16, 1.32, 0.24
  %v18 = vsel %vm15, 0.84, %v17
  %v19 = vsel %vm16, -0.66, -0.06
  %v20 = vsel %vm15, -0.42, %v19
  %v21 = vmul.f32 %v11, %v18
  %v22 = vmul.f32 %v12, %v18
  %v23 = vadd.f32 %v21, %v20
  %v24 = vadd.f32 %v22, %v20
  %v25 = vld [vmem:[%s1] sm:$0x7]
  %v26 = vld [vmem:[%s1 + $0x4] sm:$0x7]
  %v27 = vmul.f32 %v25, 50.0
  %v28 = vmul.f32 %v26, 50.0
  %v29 = vround.ne.pseudo %v27
  %v30 = vround.ne.pseudo %v28
  %v31 = vmul.f32 %v29, 0.02
  %v32 = vmul.f32 %v30, 0.02
  %v33 = vmul.f32 %v11, 0.12
  %v34 = vmul.f32 %v12, 0.12
  %v35 = vsub.f32 %v31, 0.05
  %v36 = vsub.f32 %v32, 0.05
  %v37 = vadd.f32 %v33, %v35
  %v38 = vadd.f32 %v34, %v36
  %v39 = vlaneseq
  %v40 = vand.u32 %v39, 127
  %vm41 = vcmp.lt.s32.totalorder %v40, 32
  %v42 = vsel %vm41, %v23, %v37
  %v43 = vsel %vm41, %v24, %v38
  %44 = vst [vmem:[%s2] sm:$0x7] %v42
  %45 = vst [vmem:[%s2 + $0x4] sm:$0x7] %v43
  // Predicated region
  $region10: #{tpu_custom_call.1} parent=0 // pred_check
    _
  $region11: #{tpu_custom_call.1} parent=0 // pred_check_branch
    %47 = sbr.rel (0) target = $region13
  $region12: #{tpu_custom_call.1} parent=0 // pred_region
    _
  $region13: #{tpu_custom_call.1} parent=0 // pred_fallthru
    _
  // Predicated region
  $region14: #{tpu_custom_call.1} parent=0 // pred_check
    _
  $region15: #{tpu_custom_call.1} parent=0 // pred_check_branch
    %49 = sbr.rel (0) target = $region17
  $region16: #{tpu_custom_call.1} parent=0 // pred_region
    _
  $region17: #{tpu_custom_call.1} parent=0 // pred_fallthru
    _

</llo_original>
